<compile_context>
chip_gen: v7x
topology: tpu7x:2x2x1
jax: 0.10.0
libtpu: 0.0.40
codegen_flags: <defaults>
</compile_context>

<pallas_src>
import functools

import jax
import jax.numpy as jnp
from jax import lax
from jax.experimental import pallas as pl
from jax.experimental.pallas import tpu as pltpu

LANE = 128      # vreg lane width
SUBLANE = 8     # vreg sublane count (f32)


def _round_up(x, m):
    return (x + m - 1) // m * m


def temporal_encoder_kernel(x_ref, wc_ref, bc_ref, whh_ref, bhh_ref,
                            out_ref, gi_scr, *, seq_len, b_pad, l_pad):
    """Single-invocation kernel (grid=(1,)).

    Phase 1 (non-recurrent): gi_all = X @ W_comb + b_comb for every timestep in
                             one MXU matmul, stored to VMEM scratch.
    Phase 2 (recurrent):     lax.fori_loop over T; per step only the
                             hidden-dependent (Bp,Lp)@(Lp,3Lp) matmul plus the
                             gate elementwise math, with h carried in vregs.

    x_ref   : (T*Bp, D_in)   zero-padded, time-major, flattened
    wc_ref  : (D_in, 3*Lp)   fused fc_in∘W_ih; gate g occupies cols [g*Lp, g*Lp+L)
    bc_ref  : (1, 3*Lp)      fused bias, same gate layout
    whh_ref : (Lp, 3*Lp)     W_hh^T, zero-padded rows/cols
    bhh_ref : (1, 3*Lp)
    out_ref : (Bp, Lp)       final hidden state (padded, lane-dense store)
    gi_scr  : (T*Bp, 3*Lp)   VMEM scratch: hidden-independent gate pre-activations
    """
    # ---- Phase 1: hidden-independent projection for ALL timesteps at once.
    gi_scr[...] = (jnp.dot(x_ref[...], wc_ref[...],
                           preferred_element_type=jnp.float32)
                   + bc_ref[...])

    whh = whh_ref[...]
    bhh = bhh_ref[...]

    # ---- Phase 2: serial GRU recurrence.
    def step(t, h):
        base = pl.multiple_of(t * b_pad, b_pad)
        gi = gi_scr[pl.ds(base, b_pad), :]                       # (Bp, 3Lp)
        gh = jnp.dot(h, whh, preferred_element_type=jnp.float32) + bhh
        # Gate slices start at 128-lane boundaries -> plain vreg reads.
        r = jax.nn.sigmoid(gi[:, 0 * l_pad:1 * l_pad] + gh[:, 0 * l_pad:1 * l_pad])
        z = jax.nn.sigmoid(gi[:, 1 * l_pad:2 * l_pad] + gh[:, 1 * l_pad:2 * l_pad])
        n = jnp.tanh(gi[:, 2 * l_pad:3 * l_pad] + r * gh[:, 2 * l_pad:3 * l_pad])
        return (1.0 - z) * n + z * h

    h0 = jnp.zeros((b_pad, l_pad), jnp.float32)
    h_T = lax.fori_loop(0, seq_len, step, h0)
    out_ref[...] = h_T.astype(out_ref.dtype)


def temporal_encoder(latent_A_seq, params):
    """latent_A_seq: (B, T, D_in) float32  ->  (B, L) float32."""
    B, T, D_in = latent_A_seq.shape
    wfc, bfc, wih, bih, whh, bhh = (
        params["wfc"], params["bfc"], params["wih"],
        params["bih"], params["whh"], params["bhh"])
    L = whh.shape[0]
    Lp = _round_up(L, LANE)          # gate block padded to one full lane group
    Bp = _round_up(B, SUBLANE)       # batch padded to sublane multiple

    # --- Algebraic fusion: fc_in has no nonlinearity, so Linear∘Linear collapses.
    w_comb = wfc @ wih               # (D_in, 3L)
    b_comb = bfc @ wih + bih         # (1, 3L)

    def pad_gates(m, rows_out):
        """(rows, 3L) -> (rows_out, 3*Lp); gate g moved to cols [g*Lp, g*Lp+L)."""
        rows = m.shape[0]
        out = jnp.zeros((rows_out, 3 * Lp), jnp.float32)
        for g in range(3):
            out = out.at[:rows, g * Lp:g * Lp + L].set(m[:, g * L:(g + 1) * L])
        return out

    wc_p = pad_gates(w_comb, D_in)    # (D_in, 3Lp)
    bc_p = pad_gates(b_comb, 1)       # (1, 3Lp)
    whh_p = pad_gates(whh, Lp)        # (Lp, 3Lp)  (rows L..Lp are zero)
    bhh_p = pad_gates(bhh, 1)         # (1, 3Lp)
    # Padding is exact: padded h lanes start at 0 and stay 0 (z_pad=0.5, n_pad=0),
    # and zero weight rows/cols keep them from contaminating real lanes.

    # --- Time-major, batch padded, flattened to (T*Bp, D_in) for the batched matmul.
    x_tm = jnp.transpose(latent_A_seq, (1, 0, 2)).astype(jnp.float32)  # (T, B, D_in)
    x_tm = jnp.pad(x_tm, ((0, 0), (0, Bp - B), (0, 0)))                # (T, Bp, D_in)
    x_flat = x_tm.reshape(T * Bp, D_in)

    kernel = functools.partial(temporal_encoder_kernel,
                               seq_len=T, b_pad=Bp, l_pad=Lp)

    # NOTE: all buffers here are tiny (<1 MiB).  For very large T, chunk the time
    # axis (grid over time blocks with h carried in scratch) to respect the
    # 32 MiB scoped-VMEM default, especially on v7x (64 MiB physical).
    out_p = pl.pallas_call(
        kernel,
        out_shape=jax.ShapeDtypeStruct((Bp, Lp), jnp.float32),
        grid_spec=pltpu.PrefetchScalarGridSpec(
            num_scalar_prefetch=0,
            grid=(1,),
            in_specs=[
                pl.BlockSpec((T * Bp, D_in), lambda i: (0, 0)),   # X (flattened)
                pl.BlockSpec((D_in, 3 * Lp), lambda i: (0, 0)),   # W_comb
                pl.BlockSpec((1, 3 * Lp), lambda i: (0, 0)),      # b_comb
                pl.BlockSpec((Lp, 3 * Lp), lambda i: (0, 0)),     # W_hh^T
                pl.BlockSpec((1, 3 * Lp), lambda i: (0, 0)),      # b_hh
            ],
            out_specs=pl.BlockSpec((Bp, Lp), lambda i: (0, 0)),
            scratch_shapes=[pltpu.VMEM((T * Bp, 3 * Lp), jnp.float32)],
        ),
        compiler_params=pltpu.CompilerParams(
            dimension_semantics=("arbitrary",)),   # recurrence is serial
    )(x_flat, wc_p, bc_p, whh_p, bhh_p)

    return out_p[:B, :L]


def make_params(key, input_size, hidden_size, latent_dim_B):
    """Deterministic init matching the PyTorch parameter shapes.

    PyTorch stores W_ih_l0 as (3L, H) and W_hh_l0 as (3L, L); we keep the
    transposed (in, out) layout so the kernel does plain x @ W.
    """
    ks = jax.random.split(key, 6)
    kfc = 1.0 / jnp.sqrt(jnp.float32(input_size))
    kgru = 1.0 / jnp.sqrt(jnp.float32(latent_dim_B))
    u = lambda k, shape, lim: jax.random.uniform(
        k, shape, jnp.float32, minval=-lim, maxval=lim)
    return {
        "wfc": u(ks[0], (input_size, hidden_size), kfc),
        "bfc": u(ks[1], (1, hidden_size), kfc),
        "wih": u(ks[2], (hidden_size, 3 * latent_dim_B), kgru),
        "bih": u(ks[3], (1, 3 * latent_dim_B), kgru),
        "whh": u(ks[4], (latent_dim_B, 3 * latent_dim_B), kgru),
        "bhh": u(ks[5], (1, 3 * latent_dim_B), kgru),
    }


def temporal_encoder_ref(latent_A_seq, params):
    """Pure-JAX reference (mirrors torch.nn.GRU math) for validation."""
    wfc, bfc = params["wfc"], params["bfc"]
    wih, bih = params["wih"], params["bih"]
    whh, bhh = params["whh"], params["bhh"]
    B = latent_A_seq.shape[0]
    L = whh.shape[0]
    x = latent_A_seq @ wfc + bfc                       # (B, T, H)

    def step(h, x_t):
        gi = x_t @ wih + bih
        gh = h @ whh + bhh
        r = jax.nn.sigmoid(gi[:, :L] + gh[:, :L])
        z = jax.nn.sigmoid(gi[:, L:2 * L] + gh[:, L:2 * L])
        n = jnp.tanh(gi[:, 2 * L:] + r * gh[:, 2 * L:])
        h_new = (1.0 - z) * n + z * h
        return h_new, None

    h0 = jnp.zeros((B, L), jnp.float32)
    h_T, _ = lax.scan(step, h0, jnp.transpose(x, (1, 0, 2)))
    return h_T


if __name__ == "__main__":
    # Small shapes consistent with the module: (B, T, input_size) -> (B, latent_dim_B)
    batch, seq_len = 2, 8
    input_size, hidden_size, latent_dim_B = 64, 128, 8

    key = jax.random.PRNGKey(0)
    k_params, k_x = jax.random.split(key)
    params = make_params(k_params, input_size, hidden_size, latent_dim_B)
    latent_A_seq = jax.random.normal(
        k_x, (batch, seq_len, input_size), jnp.float32)

    latent_B = jax.jit(temporal_encoder)(latent_A_seq, params)
    jax.block_until_ready(latent_B)

    ref = temporal_encoder_ref(latent_A_seq, params)
    assert latent_B.shape == (batch, latent_dim_B)
    # fc_in ∘ W_ih algebraic fusion reassociates float ops -> ~1e-6 level diffs.
    assert jnp.allclose(latent_B, ref, atol=2e-5, rtol=2e-5), (
        f"max abs err {jnp.max(jnp.abs(latent_B - ref))}")

    print("KERNEL_OK")
</pallas_src>

<mosaic_0001>
module attributes {stable_mosaic.version = 11 : i64} {
  func.func @temporal_encoder_kernel(%arg0: i32, %arg1: memref<64x64xf32, #tpu.memory_space<vmem>>, %arg2: memref<64x384xf32, #tpu.memory_space<vmem>>, %arg3: memref<1x384xf32, #tpu.memory_space<vmem>>, %arg4: memref<128x384xf32, #tpu.memory_space<vmem>>, %arg5: memref<1x384xf32, #tpu.memory_space<vmem>>, %arg6: memref<8x128xf32, #tpu.memory_space<vmem>>, %arg7: memref<64x384xf32, #tpu.memory_space<vmem>>) attributes {dimension_semantics = [#tpu.dimension_semantics<arbitrary>], iteration_bounds = array<i64: 1>, scalar_prefetch = 0 : i64, scratch_operands = 1 : i64, tpu.core_type = #tpu.core_type<tc>, window_params = [{pipeline_mode = #tpu.pipeline_mode<synchronous>, transform_indices = @transform_0, window_bounds = array<i64: 64, 64>}, {pipeline_mode = #tpu.pipeline_mode<synchronous>, transform_indices = @transform_1, window_bounds = array<i64: 64, 384>}, {pipeline_mode = #tpu.pipeline_mode<synchronous>, transform_indices = @transform_2, window_bounds = array<i64: 1, 384>}, {pipeline_mode = #tpu.pipeline_mode<synchronous>, transform_indices = @transform_3, window_bounds = array<i64: 128, 384>}, {pipeline_mode = #tpu.pipeline_mode<synchronous>, transform_indices = @transform_4, window_bounds = array<i64: 1, 384>}, {pipeline_mode = #tpu.pipeline_mode<synchronous>, transform_indices = @transform_5, window_bounds = array<i64: 8, 128>}]} {
    %c0 = arith.constant 0 : index
    %c0_0 = arith.constant 0 : index
    %0 = vector.load %arg1[%c0, %c0_0] : memref<64x64xf32, #tpu.memory_space<vmem>>, vector<64x64xf32>
    %c0_1 = arith.constant 0 : index
    %c0_2 = arith.constant 0 : index
    %1 = vector.load %arg2[%c0_1, %c0_2] : memref<64x384xf32, #tpu.memory_space<vmem>>, vector<64x384xf32>
    %cst = arith.constant dense<0.000000e+00> : vector<64x384xf32>
    %2 = tpu.matmul %0, %1, %cst {dimension_numbers = #tpu.dot_dimension_numbers<[1], [0], [0], [1], [0, 0, 1, 1], [], []>} : vector<64x64xf32>, vector<64x384xf32>, vector<64x384xf32> -> vector<64x384xf32>
    %c0_3 = arith.constant 0 : index
    %c0_4 = arith.constant 0 : index
    %3 = vector.load %arg3[%c0_3, %c0_4] : memref<1x384xf32, #tpu.memory_space<vmem>>, vector<1x384xf32>
    %4 = vector.broadcast %3 : vector<1x384xf32> to vector<64x384xf32>
    %5 = arith.addf %2, %4 : vector<64x384xf32>
    %c0_5 = arith.constant 0 : index
    %c0_6 = arith.constant 0 : index
    %6 = vector.load %arg7[%c0_5, %c0_6] : memref<64x384xf32, #tpu.memory_space<vmem>>, vector<64x384xf32>
    tpu.vector_store %arg7[%c0_5, %c0_6], %5 {strides = array<i32>} : memref<64x384xf32, #tpu.memory_space<vmem>>, vector<64x384xf32>,
    %c0_7 = arith.constant 0 : index
    %c0_8 = arith.constant 0 : index
    %7 = vector.load %arg4[%c0_7, %c0_8] : memref<128x384xf32, #tpu.memory_space<vmem>>, vector<128x384xf32>
    %c0_9 = arith.constant 0 : index
    %c0_10 = arith.constant 0 : index
    %8 = vector.load %arg5[%c0_9, %c0_10] : memref<1x384xf32, #tpu.memory_space<vmem>>, vector<1x384xf32>
    %cst_11 = arith.constant 0.000000e+00 : f32
    %9 = vector.broadcast %cst_11 : f32 to vector<8x128xf32>
    %c0_i32 = arith.constant 0 : i32
    %c8_i32 = arith.constant 8 : i32
    %10 = arith.addi %c0_i32, %c8_i32 : i32
    %c1_i32 = arith.constant 1 : i32
    %11 = scf.for %arg8 = %c0_i32 to %10 step %c1_i32 iter_args(%arg9 = %9) -> (vector<8x128xf32>)  : i32 {
      %c8_i32_15 = arith.constant 8 : i32
      %13 = arith.muli %arg8, %c8_i32_15 : i32
      %14 = tpu.assume_multiple %13, 8 : i32
      %15 = arith.index_cast %14 : i32 to index
      %c0_16 = arith.constant 0 : index
      %16 = vector.load %arg7[%15, %c0_16] : memref<64x384xf32, #tpu.memory_space<vmem>>, vector<8x384xf32>
      %cst_17 = arith.constant dense<0.000000e+00> : vector<8x384xf32>
      %17 = tpu.matmul %arg9, %7, %cst_17 {dimension_numbers = #tpu.dot_dimension_numbers<[1], [0], [0], [1], [0, 0, 1, 1], [], []>} : vector<8x128xf32>, vector<128x384xf32>, vector<8x384xf32> -> vector<8x384xf32>
      %18 = vector.broadcast %8 : vector<1x384xf32> to vector<8x384xf32>
      %19 = arith.addf %17, %18 : vector<8x384xf32>
      %20 = vector.extract_strided_slice %16 {offsets = [0, 0], sizes = [8, 128], strides = [1, 1]} : vector<8x384xf32> to vector<8x128xf32>
      %21 = vector.extract_strided_slice %19 {offsets = [0, 0], sizes = [8, 128], strides = [1, 1]} : vector<8x384xf32> to vector<8x128xf32>
      %22 = arith.addf %20, %21 : vector<8x128xf32>
      %23 = arith.negf %22 : vector<8x128xf32>
      %24 = math.exp %23 : vector<8x128xf32>
      %cst_18 = arith.constant 1.000000e+00 : f32
      %25 = vector.broadcast %cst_18 : f32 to vector<8x128xf32>
      %26 = arith.addf %25, %24 : vector<8x128xf32>
      %27 = arith.divf %25, %26 : vector<8x128xf32>
      %28 = vector.extract_strided_slice %16 {offsets = [0, 128], sizes = [8, 128], strides = [1, 1]} : vector<8x384xf32> to vector<8x128xf32>
      %29 = vector.extract_strided_slice %19 {offsets = [0, 128], sizes = [8, 128], strides = [1, 1]} : vector<8x384xf32> to vector<8x128xf32>
      %30 = arith.addf %28, %29 : vector<8x128xf32>
      %31 = arith.negf %30 : vector<8x128xf32>
      %32 = math.exp %31 : vector<8x128xf32>
      %cst_19 = arith.constant 1.000000e+00 : f32
      %33 = vector.broadcast %cst_19 : f32 to vector<8x128xf32>
      %34 = arith.addf %33, %32 : vector<8x128xf32>
      %35 = arith.divf %33, %34 : vector<8x128xf32>
      %36 = vector.extract_strided_slice %16 {offsets = [0, 256], sizes = [8, 128], strides = [1, 1]} : vector<8x384xf32> to vector<8x128xf32>
      %37 = vector.extract_strided_slice %19 {offsets = [0, 256], sizes = [8, 128], strides = [1, 1]} : vector<8x384xf32> to vector<8x128xf32>
      %38 = arith.mulf %27, %37 : vector<8x128xf32>
      %39 = arith.addf %36, %38 : vector<8x128xf32>
      %40 = math.tanh %39 : vector<8x128xf32>
      %cst_20 = arith.constant 1.000000e+00 : f32
      %41 = vector.broadcast %cst_20 : f32 to vector<8x128xf32>
      %42 = arith.subf %41, %35 : vector<8x128xf32>
      %43 = arith.mulf %42, %40 : vector<8x128xf32>
      %44 = arith.mulf %35, %arg9 : vector<8x128xf32>
      %45 = arith.addf %43, %44 : vector<8x128xf32>
      scf.yield %45 : vector<8x128xf32>
    }
    %c8_i32_12 = arith.constant 8 : i32
    %c0_13 = arith.constant 0 : index
    %c0_14 = arith.constant 0 : index
    %12 = vector.load %arg6[%c0_13, %c0_14] : memref<8x128xf32, #tpu.memory_space<vmem>>, vector<8x128xf32>
    tpu.vector_store %arg6[%c0_13, %c0_14], %11 {strides = array<i32>} : memref<8x128xf32, #tpu.memory_space<vmem>>, vector<8x128xf32>,
    return
  }
  func.func @transform_0(%arg0: i32) -> (i32, i32) {
    %c0_i32 = arith.constant 0 : i32
    %c0_i32_0 = arith.constant 0 : i32
    %c0_i32_1 = arith.constant 0 : i32
    return %c0_i32, %c0_i32_0 : i32, i32
  }
  func.func @transform_1(%arg0: i32) -> (i32, i32) {
    %c0_i32 = arith.constant 0 : i32
    %c0_i32_0 = arith.constant 0 : i32
    %c0_i32_1 = arith.constant 0 : i32
    return %c0_i32, %c0_i32_0 : i32, i32
  }
  func.func @transform_2(%arg0: i32) -> (i32, i32) {
    %c0_i32 = arith.constant 0 : i32
    %c0_i32_0 = arith.constant 0 : i32
    %c0_i32_1 = arith.constant 0 : i32
    return %c0_i32, %c0_i32_0 : i32, i32
  }
  func.func @transform_3(%arg0: i32) -> (i32, i32) {
    %c0_i32 = arith.constant 0 : i32
    %c0_i32_0 = arith.constant 0 : i32
    %c0_i32_1 = arith.constant 0 : i32
    return %c0_i32, %c0_i32_0 : i32, i32
  }
  func.func @transform_4(%arg0: i32) -> (i32, i32) {
    %c0_i32 = arith.constant 0 : i32
    %c0_i32_0 = arith.constant 0 : i32
    %c0_i32_1 = arith.constant 0 : i32
    return %c0_i32, %c0_i32_0 : i32, i32
  }
  func.func @transform_5(%arg0: i32) -> (i32, i32) {
    %c0_i32 = arith.constant 0 : i32
    %c0_i32_0 = arith.constant 0 : i32
    %c0_i32_1 = arith.constant 0 : i32
    return %c0_i32, %c0_i32_0 : i32, i32
  }
}

</mosaic_0001>

<llo_original>
// kernel: temporal_encoder.1
$region0: #{temporal_encoder.1}
  #allocation0 [shape = 'u32[]', space=smem, size = 0x4, offset = 0x4, fixed_abs, tag = 'smem constant byte address 0x4 - core index']
  #allocation1 [shape = 'u32[144,128]{1,0:T(1,128)}', space=vmem, size = 0x12000, scoped, tag = 'internal scratch']
  #allocation2 [shape = 'f32[64,384]{1,0:T(8,128)}', space=vmem, size = 0x18000, scoped, tag = 'scratch operand']
  %s0 = inlined_call_operand.vmem [shape: f32[64,64], index: 0, kind: input, shape index: {}]
  %s1 = inlined_call_operand.vmem [shape: f32[64,384], index: 1, kind: input, shape index: {}]
  %s2 = inlined_call_operand.vmem [shape: f32[1,384], index: 2, kind: input, shape index: {}]
  %s3 = inlined_call_operand.vmem [shape: f32[128,384], index: 3, kind: input, shape index: {}]
  %s4 = inlined_call_operand.vmem [shape: f32[1,384], index: 4, kind: input, shape index: {}]
  %s5 = inlined_call_operand.vmem [shape: f32[8,128], index: 5, kind: output, shape index: {}]
  %s6 = sld [smem:[#allocation0]]
  $region37: #{temporal_encoder.1} parent=0
    _
  %s8 = ssub.s32 1, %s6
  %s9 = scalar_select 0, %s8, %s6
  // Predicated region
  $region2: #{temporal_encoder.1} parent=0 // pred_check
    _
  $region3: #{temporal_encoder.1} parent=0 // pred_check_branch
    %11 = sbr.rel (0) target = $region5
  $region4: #{temporal_encoder.1} parent=0 // pred_region
    _
  $region5: #{temporal_encoder.1} parent=0 // pred_fallthru
    _
  // Predicated region
  $region6: #{temporal_encoder.1} parent=0 // pred_check
    _
  $region7: #{temporal_encoder.1} parent=0 // pred_check_branch
    %13 = sbr.rel (0) target = $region9
  $region8: #{temporal_encoder.1} parent=0 // pred_region
    _
  $region9: #{temporal_encoder.1} parent=0 // pred_fallthru
    _
  // Predicated region
  $region10: #{temporal_encoder.1} parent=0 // pred_check
    _
  $region11: #{temporal_encoder.1} parent=0 // pred_check_branch
    %15 = sbr.rel (0) target = $region13
  $region12: #{temporal_encoder.1} parent=0 // pred_region
    _
  $region13: #{temporal_encoder.1} parent=0 // pred_fallthru
    _
  // Predicated region
  $region14: #{temporal_encoder.1} parent=0 // pred_check
    _
  $region15: #{temporal_encoder.1} parent=0 // pred_check_branch
    %17 = sbr.rel (0) target = $region17
  $region16: #{temporal_encoder.1} parent=0 // pred_region
    _
  $region17: #{temporal_encoder.1} parent=0 // pred_fallthru
    _
  // Predicated region
  $region18: #{temporal_encoder.1} parent=0 // pred_check
    _
  $region19: #{temporal_encoder.1} parent=0 // pred_check_branch
    %19 = sbr.rel (0) target = $region21
  $region20: #{temporal_encoder.1} parent=0 // pred_region
    _
  $region21: #{temporal_encoder.1} parent=0 // pred_fallthru
    _
  %v20 = vld [vmem:[%s0] sm:$0xff]
  %v21 = vld [vmem:[%s0 + $0x8] sm:$0xff]
  %v22 = vld [vmem:[%s0 + $0x10] sm:$0xff]
  %v23 = vld [vmem:[%s0 + $0x18] sm:$0xff]
  %v24 = vld [vmem:[%s0 + $0x20] sm:$0xff]
  %v25 = vld [vmem:[%s0 + $0x28] sm:$0xff]
  %v26 = vld [vmem:[%s0 + $0x30] sm:$0xff]
  %v27 = vld [vmem:[%s0 + $0x38] sm:$0xff]
  %v28 = vld [vmem:[%s1] sm:$0xff]
  %v29 = vld [vmem:[%s1 + $0x8] sm:$0xff]
  %v30 = vld [vmem:[%s1 + $0x10] sm:$0xff]
  %v31 = vld [vmem:[%s1 + $0x18] sm:$0xff]
  %v32 = vld [vmem:[%s1 + $0x20] sm:$0xff]
  %v33 = vld [vmem:[%s1 + $0x28] sm:$0xff]
  %v34 = vld [vmem:[%s1 + $0x30] sm:$0xff]
  %v35 = vld [vmem:[%s1 + $0x38] sm:$0xff]
  %v36 = vld [vmem:[%s1 + $0x40] sm:$0xff]
  %v37 = vld [vmem:[%s1 + $0x48] sm:$0xff]
  %v38 = vld [vmem:[%s1 + $0x50] sm:$0xff]
  %v39 = vld [vmem:[%s1 + $0x58] sm:$0xff]
  %v40 = vld [vmem:[%s1 + $0x60] sm:$0xff]
  %v41 = vld [vmem:[%s1 + $0x68] sm:$0xff]
  %v42 = vld [vmem:[%s1 + $0x70] sm:$0xff]
  %v43 = vld [vmem:[%s1 + $0x78] sm:$0xff]
  %v44 = vld [vmem:[%s1 + $0x80] sm:$0xff]
  %v45 = vld [vmem:[%s1 + $0x88] sm:$0xff]
  %v46 = vld [vmem:[%s1 + $0x90] sm:$0xff]
  %v47 = vld [vmem:[%s1 + $0x98] sm:$0xff]
  %v48 = vld [vmem:[%s1 + $0xa0] sm:$0xff]
  %v49 = vld [vmem:[%s1 + $0xa8] sm:$0xff]
  %v50 = vld [vmem:[%s1 + $0xb0] sm:$0xff]
  %v51 = vld [vmem:[%s1 + $0xb8] sm:$0xff]
  %v52 = vld [vmem:[%s2] sm:$0x7]
  %v54 = vlaneseq
  %v55 = vshrl.u32 %v54, 7
  %v56 = vsub.s32 0, %v55
  %v57 = vrot.slane %v52, %v56
  %v58 = vlaneseq
  %v59 = vshrl.u32 %v58, 7
  %v60 = vsub.s32 1, %v59
  %v61 = vrot.slane %v52, %v60
  %v62 = vlaneseq
  %v63 = vshrl.u32 %v62, 7
  %v64 = vsub.s32 2, %v63
  %v65 = vrot.slane %v52, %v64
  %vm69 = vcmask 523264
  %v71 = vsel %vm69, %v20, 0
  %v74 = vsel %vm69, %v21, 0
  %v77 = vsel %vm69, %v22, 0
  %v80 = vsel %vm69, %v23, 0
  %v83 = vsel %vm69, %v24, 0
  %v86 = vsel %vm69, %v25, 0
  %v89 = vsel %vm69, %v26, 0
  %v92 = vsel %vm69, %v27, 0
  %94 = vmatprep.subr.mxu0 %v29
  %95 = vmatpush1.msra.mxu0 %v28
  %96 = vmatprep.subr.mxu0 %v32
  %97 = vmatpush1.msra.mxu0 %v31
  %98 = vmatprep.subr.mxu0 %v35
  %99 = vmatpush1.msra.mxu0 %v34
  %100 = vmatprep.subr.mxu0 %v38
  %101 = vmatpush1.msra.mxu0 %v37
  %102 = vmatprep.subr.mxu0 %v41
  %103 = vmatpush1.msra.mxu0 %v40
  %104 = vmatprep.subr.mxu0 %v44
  %105 = vmatpush1.msra.mxu0 %v43
  %106 = vmatprep.subr.mxu0 %v47
  %107 = vmatpush1.msra.mxu0 %v46
  %108 = vmatprep.subr.mxu0 %v50
  %109 = vmatpush1.msra.mxu0 %v49
  %110 = vmatprep.subr.mxu0 0.0
  %111 = vmatpush1.msra.mxu0 0.0
  %112 = vmatprep.subr.mxu0 0.0
  %113 = vmatpush1.msra.mxu0 0.0
  %114 = vmatprep.subr.mxu0 0.0
  %115 = vmatpush1.msra.mxu0 0.0
  %116 = vmatprep.subr.mxu0 0.0
  %117 = vmatpush1.msra.mxu0 0.0
  %118 = vmatprep.subr.mxu0 0.0
  %119 = vmatpush1.msra.mxu0 0.0
  %120 = vmatprep.subr.mxu0 0.0
  %121 = vmatpush1.msra.mxu0 0.0
  %122 = vmatprep.subr.mxu0 0.0
  %123 = vmatpush1.msra.mxu0 0.0
  %124 = vmatprep.subr.mxu0 0.0
  %125 = vmatpush1.msra.mxu0 0.0
  %126 = vmatprep.subr.mxu0 0.0
  %127 = vmatpush1.msra.mxu0 0.0
  %128 = vmatprep.subr.mxu0 0.0
  %129 = vmatpush1.msra.mxu0 0.0
  %130 = vmatprep.subr.mxu0 0.0
  %131 = vmatpush1.msra.mxu0 0.0
  %132 = vmatprep.subr.mxu0 0.0
  %133 = vmatpush1.msra.mxu0 0.0
  %134 = vmatprep.subr.mxu0 0.0
  %135 = vmatpush1.msra.mxu0 0.0
  %136 = vmatprep.subr.mxu0 0.0
  %137 = vmatpush1.msra.mxu0 0.0
  %138 = vmatprep.subr.mxu0 0.0
  %139 = vmatpush1.msra.mxu0 0.0
  %140 = vmatprep.subr.mxu0 0.0
  %141 = vmatpush1.msra.mxu0 0.0
  %142 = vmatprep.subr.mxu0 0.0
  %143 = vmatpush1.msra.mxu0 0.0
  %144 = vmatprep.subr.mxu0 0.0
  %145 = vmatpush1.msra.mxu0 0.0
  %146 = vmatprep.subr.mxu0 0.0
  %147 = vmatpush1.msra.mxu0 0.0
  %148 = vmatprep.subr.mxu0 0.0
  %149 = vmatpush1.msra.mxu0 0.0
  %150 = vmatprep.subr.mxu0 0.0
  %151 = vmatpush1.msra.mxu0 0.0
  %152 = vmatprep.subr.mxu0 0.0
  %153 = vmatpush1.msra.mxu0 0.0
  %154 = vmatprep.subr.mxu0 0.0
  %155 = vmatpush1.msra.mxu0 0.0
  %156 = vmatprep.subr.mxu0 0.0
  %157 = vmatpush1.msra.mxu0 0.0
  %158 = vmatprep.mubr.f32.mxu0 0.0
  %159 = vmatmul.mubr.f32.gmra.mrb[0].mxu0 %v71
  %v160 = vpop.f32.mrb[0].mxu0
  %v161 = vadd.f32 %v57, %v160
  %v162 = vpop.f32.mrb[0].mxu0
  %v163 = vadd.f32 %v61, %v162
  %164 = vmatprep.mubr.f32.mxu0 0.0
  %165 = vmatmul.mubr.f32.gmra.mrb[0].mxu0 %v74
  %v166 = vpop.f32.mrb[0].mxu0
  %v167 = vadd.f32 %v57, %v166
  %v168 = vpop.f32.mrb[0].mxu0
  %v169 = vadd.f32 %v61, %v168
  %170 = vmatprep.mubr.f32.mxu0 0.0
  %171 = vmatmul.mubr.f32.gmra.mrb[0].mxu0 %v77
  %v172 = vpop.f32.mrb[0].mxu0
  %v173 = vadd.f32 %v57, %v172
  %v174 = vpop.f32.mrb[0].mxu0
  %v175 = vadd.f32 %v61, %v174
  %176 = vmatprep.mubr.f32.mxu0 0.0
  %177 = vmatmul.mubr.f32.gmra.mrb[0].mxu0 %v80
  %v178 = vpop.f32.mrb[0].mxu0
  %v179 = vadd.f32 %v57, %v178
  %v180 = vpop.f32.mrb[0].mxu0
  %v181 = vadd.f32 %v61, %v180
  %182 = vmatprep.mubr.f32.mxu0 0.0
  %183 = vmatmul.mubr.f32.gmra.mrb[0].mxu0 %v83
  %v184 = vpop.f32.mrb[0].mxu0
  %v185 = vadd.f32 %v57, %v184
  %v186 = vpop.f32.mrb[0].mxu0
  %v187 = vadd.f32 %v61, %v186
  %188 = vmatprep.mubr.f32.mxu0 0.0
  %189 = vmatmul.mubr.f32.gmra.mrb[0].mxu0 %v86
  %v190 = vpop.f32.mrb[0].mxu0
  %v191 = vadd.f32 %v57, %v190
  %v192 = vpop.f32.mrb[0].mxu0
  %v193 = vadd.f32 %v61, %v192
  %194 = vmatprep.mubr.f32.mxu0 0.0
  %195 = vmatmul.mubr.f32.gmra.mrb[0].mxu0 %v89
  %v196 = vpop.f32.mrb[0].mxu0
  %v197 = vadd.f32 %v57, %v196
  %v198 = vpop.f32.mrb[0].mxu0
  %v199 = vadd.f32 %v61, %v198
  %200 = vmatprep.mubr.f32.mxu0 0.0
  %201 = vmatmul.mubr.f32.gmra.mrb[0].mxu0 %v92
  %v202 = vpop.f32.mrb[0].mxu0
  %v203 = vadd.f32 %v57, %v202
  %v204 = vpop.f32.mrb[0].mxu0
  %v205 = vadd.f32 %v61, %v204
  %206 = vdwg.mxu0
  %207 = vmatprep.subr.mxu0 0.0
  %208 = vmatpush1.msra.mxu0 %v30
  %209 = vmatprep.subr.mxu0 0.0
  %210 = vmatpush1.msra.mxu0 %v33
  %211 = vmatprep.subr.mxu0 0.0
  %212 = vmatpush1.msra.mxu0 %v36
  %213 = vmatprep.subr.mxu0 0.0
  %214 = vmatpush1.msra.mxu0 %v39
  %215 = vmatprep.subr.mxu0 0.0
  %216 = vmatpush1.msra.mxu0 %v42
  %217 = vmatprep.subr.mxu0 0.0
  %218 = vmatpush1.msra.mxu0 %v45
  %219 = vmatprep.subr.mxu0 0.0
  %220 = vmatpush1.msra.mxu0 %v48
  %221 = vmatprep.subr.mxu0 0.0
  %222 = vmatpush1.msra.mxu0 %v51
  %223 = vmatprep.subr.mxu0 0.0
  %224 = vmatpush1.msra.mxu0 0.0
  %225 = vmatprep.subr.mxu0 0.0
  %226 = vmatpush1.msra.mxu0 0.0
  %227 = vmatprep.subr.mxu0 0.0
  %228 = vmatpush1.msra.mxu0 0.0
  %229 = vmatprep.subr.mxu0 0.0
  %230 = vmatpush1.msra.mxu0 0.0
  %231 = vmatprep.subr.mxu0 0.0
  %232 = vmatpush1.msra.mxu0 0.0
  %233 = vmatprep.subr.mxu0 0.0
  %234 = vmatpush1.msra.mxu0 0.0
  %235 = vmatprep.subr.mxu0 0.0
  %236 = vmatpush1.msra.mxu0 0.0
  %237 = vmatprep.subr.mxu0 0.0
  %238 = vmatpush1.msra.mxu0 0.0
  %239 = vmatprep.subr.mxu0 0.0
  %240 = vmatpush1.msra.mxu0 0.0
  %241 = vmatprep.subr.mxu0 0.0
  %242 = vmatpush1.msra.mxu0 0.0
  %243 = vmatprep.subr.mxu0 0.0
  %244 = vmatpush1.msra.mxu0 0.0
  %245 = vmatprep.subr.mxu0 0.0
  %246 = vmatpush1.msra.mxu0 0.0
  %247 = vmatprep.subr.mxu0 0.0
  %248 = vmatpush1.msra.mxu0 0.0
  %249 = vmatprep.subr.mxu0 0.0
  %250 = vmatpush1.msra.mxu0 0.0
  %251 = vmatprep.subr.mxu0 0.0
  %252 = vmatpush1.msra.mxu0 0.0
  %253 = vmatprep.subr.mxu0 0.0
  %254 = vmatpush1.msra.mxu0 0.0
  %255 = vmatprep.subr.mxu0 0.0
  %256 = vmatpush1.msra.mxu0 0.0
  %257 = vmatprep.subr.mxu0 0.0
  %258 = vmatpush1.msra.mxu0 0.0
  %259 = vmatprep.subr.mxu0 0.0
  %260 = vmatpush1.msra.mxu0 0.0
  %261 = vmatprep.subr.mxu0 0.0
  %262 = vmatpush1.msra.mxu0 0.0
  %263 = vmatprep.subr.mxu0 0.0
  %264 = vmatpush1.msra.mxu0 0.0
  %265 = vmatprep.subr.mxu0 0.0
  %266 = vmatpush1.msra.mxu0 0.0
  %267 = vmatprep.subr.mxu0 0.0
  %268 = vmatpush1.msra.mxu0 0.0
  %269 = vmatprep.subr.mxu0 0.0
  %270 = vmatpush1.msra.mxu0 0.0
  %271 = vmatprep.mubr.f32.mxu0 0.0
  %272 = vmatmul.mubr.f32.gmra.mrb[0].mxu0 %v71
  %v273 = vpop.f32.mrb[0].mxu0
  %v274 = vadd.f32 %v65, %v273
  %v275 = vpop.f32.mrb[0].mxu0
  %276 = vmatprep.mubr.f32.mxu0 0.0
  %277 = vmatmul.mubr.f32.gmra.mrb[0].mxu0 %v74
  %v278 = vpop.f32.mrb[0].mxu0
  %v279 = vadd.f32 %v65, %v278
  %v280 = vpop.f32.mrb[0].mxu0
  %281 = vmatprep.mubr.f32.mxu0 0.0
  %282 = vmatmul.mubr.f32.gmra.mrb[0].mxu0 %v77
  %v283 = vpop.f32.mrb[0].mxu0
  %v284 = vadd.f32 %v65, %v283
  %v285 = vpop.f32.mrb[0].mxu0
  %286 = vmatprep.mubr.f32.mxu0 0.0
  %287 = vmatmul.mubr.f32.gmra.mrb[0].mxu0 %v80
  %v288 = vpop.f32.mrb[0].mxu0
  %v289 = vadd.f32 %v65, %v288
  %v290 = vpop.f32.mrb[0].mxu0
  %291 = vmatprep.mubr.f32.mxu0 0.0
  %292 = vmatmul.mubr.f32.gmra.mrb[0].mxu0 %v83
  %v293 = vpop.f32.mrb[0].mxu0
  %v294 = vadd.f32 %v65, %v293
  %v295 = vpop.f32.mrb[0].mxu0
  %296 = vmatprep.mubr.f32.mxu0 0.0
  %297 = vmatmul.mubr.f32.gmra.mrb[0].mxu0 %v86
  %v298 = vpop.f32.mrb[0].mxu0
  %v299 = vadd.f32 %v65, %v298
  %v300 = vpop.f32.mrb[0].mxu0
  %301 = vmatprep.mubr.f32.mxu0 0.0
  %302 = vmatmul.mubr.f32.gmra.mrb[0].mxu0 %v89
  %v303 = vpop.f32.mrb[0].mxu0
  %v304 = vadd.f32 %v65, %v303
  %v305 = vpop.f32.mrb[0].mxu0
  %306 = vmatprep.mubr.f32.mxu0 0.0
  %307 = vmatmul.mubr.f32.gmra.mrb[0].mxu0 %v92
  %v308 = vpop.f32.mrb[0].mxu0
  %v309 = vadd.f32 %v65, %v308
  %v310 = vpop.f32.mrb[0].mxu0
  %311 = vdwg.mxu0
  %312 = vst [vmem:[#allocation2] sm:$0xff] %v161
  %313 = vst [vmem:[#allocation2 + $0x8] sm:$0xff] %v163
  %314 = vst [vmem:[#allocation2 + $0x10] sm:$0xff] %v274
  %315 = vst [vmem:[#allocation2 + $0x18] sm:$0xff] %v167
  %316 = vst [vmem:[#allocation2 + $0x20] sm:$0xff] %v169
  %317 = vst [vmem:[#allocation2 + $0x28] sm:$0xff] %v279
  %318 = vst [vmem:[#allocation2 + $0x30] sm:$0xff] %v173
  %319 = vst [vmem:[#allocation2 + $0x38] sm:$0xff] %v175
  %320 = vst [vmem:[#allocation2 + $0x40] sm:$0xff] %v284
  %321 = vst [vmem:[#allocation2 + $0x48] sm:$0xff] %v179
  %322 = vst [vmem:[#allocation2 + $0x50] sm:$0xff] %v181
  %323 = vst [vmem:[#allocation2 + $0x58] sm:$0xff] %v289
  %324 = vst [vmem:[#allocation2 + $0x60] sm:$0xff] %v185
  %325 = vst [vmem:[#allocation2 + $0x68] sm:$0xff] %v187
  %326 = vst [vmem:[#allocation2 + $0x70] sm:$0xff] %v294
  %327 = vst [vmem:[#allocation2 + $0x78] sm:$0xff] %v191
  %328 = vst [vmem:[#allocation2 + $0x80] sm:$0xff] %v193
  %329 = vst [vmem:[#allocation2 + $0x88] sm:$0xff] %v299
  %330 = vst [vmem:[#allocation2 + $0x90] sm:$0xff] %v197
  %331 = vst [vmem:[#allocation2 + $0x98] sm:$0xff] %v199
  %332 = vst [vmem:[#allocation2 + $0xa0] sm:$0xff] %v304
  %333 = vst [vmem:[#allocation2 + $0xa8] sm:$0xff] %v203
  %334 = vst [vmem:[#allocation2 + $0xb0] sm:$0xff] %v205
  %335 = vst [vmem:[#allocation2 + $0xb8] sm:$0xff] %v309
  %v336 = vld [vmem:[%s3] sm:$0xff]
  %v337 = vld [vmem:[%s3 + $0x8] sm:$0xff]
  %v338 = vld [vmem:[%s3 + $0x10] sm:$0xff]
  %v339 = vld [vmem:[%s3 + $0x18] sm:$0xff]
  %v340 = vld [vmem:[%s3 + $0x20] sm:$0xff]
  %v341 = vld [vmem:[%s3 + $0x28] sm:$0xff]
  %v342 = vld [vmem:[%s3 + $0x30] sm:$0xff]
  %v343 = vld [vmem:[%s3 + $0x38] sm:$0xff]
  %v344 = vld [vmem:[%s3 + $0x40] sm:$0xff]
  %v345 = vld [vmem:[%s3 + $0x48] sm:$0xff]
  %v346 = vld [vmem:[%s3 + $0x50] sm:$0xff]
  %v347 = vld [vmem:[%s3 + $0x58] sm:$0xff]
  %v348 = vld [vmem:[%s3 + $0x60] sm:$0xff]
  %v349 = vld [vmem:[%s3 + $0x68] sm:$0xff]
  %v350 = vld [vmem:[%s3 + $0x70] sm:$0xff]
  %v351 = vld [vmem:[%s3 + $0x78] sm:$0xff]
  %v352 = vld [vmem:[%s3 + $0x80] sm:$0xff]
  %v353 = vld [vmem:[%s3 + $0x88] sm:$0xff]
  %v354 = vld [vmem:[%s3 + $0x90] sm:$0xff]
  %v355 = vld [vmem:[%s3 + $0x98] sm:$0xff]
  %v356 = vld [vmem:[%s3 + $0xa0] sm:$0xff]
  %v357 = vld [vmem:[%s3 + $0xa8] sm:$0xff]
  %v358 = vld [vmem:[%s3 + $0xb0] sm:$0xff]
  %v359 = vld [vmem:[%s3 + $0xb8] sm:$0xff]
  %v360 = vld [vmem:[%s3 + $0xc0] sm:$0xff]
  %v361 = vld [vmem:[%s3 + $0xc8] sm:$0xff]
  %v362 = vld [vmem:[%s3 + $0xd0] sm:$0xff]
  %v363 = vld [vmem:[%s3 + $0xd8] sm:$0xff]
  %v364 = vld [vmem:[%s3 + $0xe0] sm:$0xff]
  %v365 = vld [vmem:[%s3 + $0xe8] sm:$0xff]
  %v366 = vld [vmem:[%s3 + $0xf0] sm:$0xff]
  %v367 = vld [vmem:[%s3 + $0xf8] sm:$0xff]
  %v368 = vld [vmem:[%s3 + $0x100] sm:$0xff]
  %v369 = vld [vmem:[%s3 + $0x108] sm:$0xff]
  %v370 = vld [vmem:[%s3 + $0x110] sm:$0xff]
  %v371 = vld [vmem:[%s3 + $0x118] sm:$0xff]
  %v372 = vld [vmem:[%s3 + $0x120] sm:$0xff]
  %v373 = vld [vmem:[%s3 + $0x128] sm:$0xff]
  %v374 = vld [vmem:[%s3 + $0x130] sm:$0xff]
  %v375 = vld [vmem:[%s3 + $0x138] sm:$0xff]
  %v376 = vld [vmem:[%s3 + $0x140] sm:$0xff]
  %v377 = vld [vmem:[%s3 + $0x148] sm:$0xff]
  %v378 = vld [vmem:[%s3 + $0x150] sm:$0xff]
  %v379 = vld [vmem:[%s3 + $0x158] sm:$0xff]
  %v380 = vld [vmem:[%s3 + $0x160] sm:$0xff]
  %v381 = vld [vmem:[%s3 + $0x168] sm:$0xff]
  %v382 = vld [vmem:[%s3 + $0x170] sm:$0xff]
  %v383 = vld [vmem:[%s3 + $0x178] sm:$0xff]
  %v384 = vld [vmem:[%s4] sm:$0x7]
  loop: start=0, step=1, limit=8
  $region22: #{temporal_encoder.1} parent=0 // loop_pre_header
    _
  $region23: #{temporal_encoder.1} parent=0 // loop_header
    %s386 = sphi 0, %s390
    %p387 = scmp.ge.s32.totalorder %s386, 8
    %v391 = vphi 0.0, %v578
  $region24: #{temporal_encoder.1} parent=0 // loop_header_branch
    %389 = sbr.rel (%p387) target = $region28
  $region25: #{temporal_encoder.1} parent=0 // loop_body
    %s392 = smul.u32 %s386, 8
    %s393 = sshra.s32 %s392, 3
    %s394 = sand.u32 %s392, 7
    %s395 = smul.u32 %s393, 3
    %s396 = smul.addr %s395, 8
    %s397 = scalar_lea.vmem [#allocation2], %s396
    %v398 = vld [vmem:[%s397] sm:$0xff]
    %v399 = vld [vmem:[%s397 + $0x8] sm:$0xff]
    %v400 = vld [vmem:[%s397 + $0x10] sm:$0xff]
    %v402 = vlaneseq
    %v403 = vshrl.u32 %v402, 7
    %v404 = vsub.s32 0, %v403
    %v405 = vrot.slane %v384, %v404
    %v406 = vlaneseq
    %v407 = vshrl.u32 %v406, 7
    %v408 = vsub.s32 1, %v407
    %v409 = vrot.slane %v384, %v408
    %v410 = vlaneseq
    %v411 = vshrl.u32 %v410, 7
    %v412 = vsub.s32 2, %v411
    %v413 = vrot.slane %v384, %v412
    %417 = vmatprep.subr.mxu0 %v337
    %418 = vmatpush1.msra.mxu0 %v336
    %419 = vmatprep.subr.mxu0 %v340
    %420 = vmatpush1.msra.mxu0 %v339
    %421 = vmatprep.subr.mxu0 %v343
    %422 = vmatpush1.msra.mxu0 %v342
    %423 = vmatprep.subr.mxu0 %v346
    %424 = vmatpush1.msra.mxu0 %v345
    %425 = vmatprep.subr.mxu0 %v349
    %426 = vmatpush1.msra.mxu0 %v348
    %427 = vmatprep.subr.mxu0 %v352
    %428 = vmatpush1.msra.mxu0 %v351
    %429 = vmatprep.subr.mxu0 %v355
    %430 = vmatpush1.msra.mxu0 %v354
    %431 = vmatprep.subr.mxu0 %v358
    %432 = vmatpush1.msra.mxu0 %v357
    %433 = vmatprep.subr.mxu0 %v361
    %434 = vmatpush1.msra.mxu0 %v360
    %435 = vmatprep.subr.mxu0 %v364
    %436 = vmatpush1.msra.mxu0 %v363
    %437 = vmatprep.subr.mxu0 %v367
    %438 = vmatpush1.msra.mxu0 %v366
    %439 = vmatprep.subr.mxu0 %v370
    %440 = vmatpush1.msra.mxu0 %v369
    %441 = vmatprep.subr.mxu0 %v373
    %442 = vmatpush1.msra.mxu0 %v372
    %443 = vmatprep.subr.mxu0 %v376
    %444 = vmatpush1.msra.mxu0 %v375
    %445 = vmatprep.subr.mxu0 %v379
    %446 = vmatpush1.msra.mxu0 %v378
    %447 = vmatprep.subr.mxu0 %v382
    %448 = vmatpush1.msra.mxu0 %v381
    %449 = vmatprep.subr.mxu0 0.0
    %450 = vmatpush1.msra.mxu0 0.0
    %451 = vmatprep.subr.mxu0 0.0
    %452 = vmatpush1.msra.mxu0 0.0
    %453 = vmatprep.subr.mxu0 0.0
    %454 = vmatpush1.msra.mxu0 0.0
    %455 = vmatprep.subr.mxu0 0.0
    %456 = vmatpush1.msra.mxu0 0.0
    %457 = vmatprep.subr.mxu0 0.0
    %458 = vmatpush1.msra.mxu0 0.0
    %459 = vmatprep.subr.mxu0 0.0
    %460 = vmatpush1.msra.mxu0 0.0
    %461 = vmatprep.subr.mxu0 0.0
    %462 = vmatpush1.msra.mxu0 0.0
    %463 = vmatprep.subr.mxu0 0.0
    %464 = vmatpush1.msra.mxu0 0.0
    %465 = vmatprep.subr.mxu0 0.0
    %466 = vmatpush1.msra.mxu0 0.0
    %467 = vmatprep.subr.mxu0 0.0
    %468 = vmatpush1.msra.mxu0 0.0
    %469 = vmatprep.subr.mxu0 0.0
    %470 = vmatpush1.msra.mxu0 0.0
    %471 = vmatprep.subr.mxu0 0.0
    %472 = vmatpush1.msra.mxu0 0.0
    %473 = vmatprep.subr.mxu0 0.0
    %474 = vmatpush1.msra.mxu0 0.0
    %475 = vmatprep.subr.mxu0 0.0
    %476 = vmatpush1.msra.mxu0 0.0
    %477 = vmatprep.subr.mxu0 0.0
    %478 = vmatpush1.msra.mxu0 0.0
    %479 = vmatprep.subr.mxu0 0.0
    %480 = vmatpush1.msra.mxu0 0.0
    %481 = vmatprep.mubr.f32.mxu0 0.0
    %482 = vmatmul.mubr.f32.gmra.mrb[0].mxu0 %v391
    %v483 = vpop.f32.mrb[0].mxu0
    %v484 = vadd.f32 %v405, %v483
    %v485 = vpop.f32.mrb[0].mxu0
    %v486 = vadd.f32 %v409, %v485
    %487 = vdwg.mxu0
    %488 = vmatprep.subr.mxu0 0.0
    %489 = vmatpush1.msra.mxu0 %v338
    %490 = vmatprep.subr.mxu0 0.0
    %491 = vmatpush1.msra.mxu0 %v341
    %492 = vmatprep.subr.mxu0 0.0
    %493 = vmatpush1.msra.mxu0 %v344
    %494 = vmatprep.subr.mxu0 0.0
    %495 = vmatpush1.msra.mxu0 %v347
    %496 = vmatprep.subr.mxu0 0.0
    %497 = vmatpush1.msra.mxu0 %v350
    %498 = vmatprep.subr.mxu0 0.0
    %499 = vmatpush1.msra.mxu0 %v353
    %500 = vmatprep.subr.mxu0 0.0
    %501 = vmatpush1.msra.mxu0 %v356
    %502 = vmatprep.subr.mxu0 0.0
    %503 = vmatpush1.msra.mxu0 %v359
    %504 = vmatprep.subr.mxu0 0.0
    %505 = vmatpush1.msra.mxu0 %v362
    %506 = vmatprep.subr.mxu0 0.0
    %507 = vmatpush1.msra.mxu0 %v365
    %508 = vmatprep.subr.mxu0 0.0
    %509 = vmatpush1.msra.mxu0 %v368
    %510 = vmatprep.subr.mxu0 0.0
    %511 = vmatpush1.msra.mxu0 %v371
    %512 = vmatprep.subr.mxu0 0.0
    %513 = vmatpush1.msra.mxu0 %v374
    %514 = vmatprep.subr.mxu0 0.0
    %515 = vmatpush1.msra.mxu0 %v377
    %516 = vmatprep.subr.mxu0 0.0
    %517 = vmatpush1.msra.mxu0 %v380
    %518 = vmatprep.subr.mxu0 0.0
    %519 = vmatpush1.msra.mxu0 %v383
    %520 = vmatprep.subr.mxu0 0.0
    %521 = vmatpush1.msra.mxu0 0.0
    %522 = vmatprep.subr.mxu0 0.0
    %523 = vmatpush1.msra.mxu0 0.0
    %524 = vmatprep.subr.mxu0 0.0
    %525 = vmatpush1.msra.mxu0 0.0
    %526 = vmatprep.subr.mxu0 0.0
    %527 = vmatpush1.msra.mxu0 0.0
    %528 = vmatprep.subr.mxu0 0.0
    %529 = vmatpush1.msra.mxu0 0.0
    %530 = vmatprep.subr.mxu0 0.0
    %531 = vmatpush1.msra.mxu0 0.0
    %532 = vmatprep.subr.mxu0 0.0
    %533 = vmatpush1.msra.mxu0 0.0
    %534 = vmatprep.subr.mxu0 0.0
    %535 = vmatpush1.msra.mxu0 0.0
    %536 = vmatprep.subr.mxu0 0.0
    %537 = vmatpush1.msra.mxu0 0.0
    %538 = vmatprep.subr.mxu0 0.0
    %539 = vmatpush1.msra.mxu0 0.0
    %540 = vmatprep.subr.mxu0 0.0
    %541 = vmatpush1.msra.mxu0 0.0
    %542 = vmatprep.subr.mxu0 0.0
    %543 = vmatpush1.msra.mxu0 0.0
    %544 = vmatprep.subr.mxu0 0.0
    %545 = vmatpush1.msra.mxu0 0.0
    %546 = vmatprep.subr.mxu0 0.0
    %547 = vmatpush1.msra.mxu0 0.0
    %548 = vmatprep.subr.mxu0 0.0
    %549 = vmatpush1.msra.mxu0 0.0
    %550 = vmatprep.subr.mxu0 0.0
    %551 = vmatpush1.msra.mxu0 0.0
    %552 = vmatprep.mubr.f32.mxu0 0.0
    %553 = vmatmul.mubr.f32.gmra.mrb[0].mxu0 %v391
    %v554 = vpop.f32.mrb[0].mxu0
    %v555 = vadd.f32 %v413, %v554
    %v556 = vpop.f32.mrb[0].mxu0
    %557 = vdwg.mxu0
    %v558 = vadd.f32 %v398, %v484
    %v559 = vxor.u32 %v558, 2147483648
    %v560 = vmul.f32 %v559, 1.442695
    %v561 = vpow.pop %v560
    %v562 = vadd.f32 %v561, 1.0
    %v563 = vrcp.pop %v562
    %v564 = vmul.f32 1.0, %v563
    %v565 = vadd.f32 %v399, %v486
    %v566 = vxor.u32 %v565, 2147483648
    %v567 = vmul.f32 %v566, 1.442695
    %v568 = vpow.pop %v567
    %v569 = vadd.f32 %v568, 1.0
    %v570 = vrcp.pop %v569
    %v571 = vmul.f32 1.0, %v570
    %v572 = vmul.f32 %v564, %v555
    %v573 = vadd.f32 %v400, %v572
    %v574 = vtanh.pop %v573
    %v575 = vsub.f32 1.0, %v571
    %v576 = vmul.f32 %v575, %v574
    %v577 = vmul.f32 %v571, %v391
    %v578 = vadd.f32 %v576, %v577
  $region26: #{temporal_encoder.1} parent=0 // loop_footer
    %s390 = sadd.s32 1, %s386
  $region27: #{temporal_encoder.1} parent=0 // loop_footer_branch
    %385 = sbr.rel target = $region23
  $region28: #{temporal_encoder.1} parent=0 // loop_exit
    _
  %579 = vst [vmem:[%s5] sm:$0xff] %v391
  // Predicated region
  $region29: #{temporal_encoder.1} parent=0 // pred_check
    _
  $region30: #{temporal_encoder.1} parent=0 // pred_check_branch
    %581 = sbr.rel (0) target = $region32
  $region31: #{temporal_encoder.1} parent=0 // pred_region
    _
  $region32: #{temporal_encoder.1} parent=0 // pred_fallthru
    _
  // Predicated region
  $region33: #{temporal_encoder.1} parent=0 // pred_check
    _
  $region34: #{temporal_encoder.1} parent=0 // pred_check_branch
    %583 = sbr.rel (0) target = $region36
  $region35: #{temporal_encoder.1} parent=0 // pred_region
    _
  $region36: #{temporal_encoder.1} parent=0 // pred_fallthru
    _

</llo_original>
